<compile_context>
chip_gen: v6e
topology: v6e:2x2x1
jax: 0.10.0
libtpu: 0.0.40
codegen_flags: <defaults>
</compile_context>

<pallas_src>
import jax
import jax.numpy as jnp
from jax.experimental import pallas as pl
from jax.experimental.pallas import tpu as pltpu


# ---------------- configuration ----------------

_LANE = 128                         # lane-dense last dim (vreg lane width)
_TARGET_BLOCK_BYTES = 8 * 1024 * 1024   # ~8 MiB blocks (hides per-step overhead)
_MIN_GRID_STEPS = 4                 # keep both v7x TensorCores fed
_SMALL_SIZE_BYTES = 512 * 1024      # below this, let XLA fuse -alpha*g upstream
_VMEM_LIMIT_BYTES = 48 * 1024 * 1024


def _round_up(x, m):
    return ((x + m - 1) // m) * m


def _choose_block_rows(rows, itemsize):
    """Pick block rows: ~8 MiB blocks, >= _MIN_GRID_STEPS steps, sublane-aligned."""
    if rows <= 16:
        return rows                                   # single full-extent block
    by_bytes = max(8, (_TARGET_BLOCK_BYTES // (itemsize * _LANE)) // 8 * 8)
    by_steps = max(8, _round_up(pl.cdiv(rows, _MIN_GRID_STEPS), 8))
    return min(by_bytes, by_steps)


# ---------------- Pallas backward kernel ----------------

def _neg_scale_kernel(neg_alpha_ref, g_ref, o_ref):
    # neg_alpha_ref: (1,) f32 scalar in SMEM (no recompile when alpha changes).
    # Compute in f32 so low-precision (bf16) gradients keep alpha precision;
    # single vector-scalar multiply per vreg, fully hidden under the HBM bound.
    s = neg_alpha_ref[0]
    o_ref[...] = (g_ref[...].astype(jnp.float32) * s).astype(o_ref.dtype)


def _neg_scale_pallas(g, alpha):
    """grad_x = -alpha * g as a tiled, lane-dense, memory-bound Pallas kernel."""
    orig_shape = g.shape
    dtype = g.dtype
    n = g.size
    assert n % _LANE == 0, "Pallas path requires size % 128 == 0"

    itemsize = jnp.dtype(dtype).itemsize
    rows = n // _LANE
    g2 = g.reshape(rows, _LANE)                       # free view, no HBM pass

    block_rows = _choose_block_rows(rows, itemsize)
    grid = (pl.cdiv(rows, block_rows),)               # partial edge block is masked

    neg_alpha = (-jnp.asarray(alpha, jnp.float32)).reshape(1)

    out = pl.pallas_call(
        _neg_scale_kernel,
        out_shape=jax.ShapeDtypeStruct((rows, _LANE), dtype),
        grid=grid,
        in_specs=[
            pl.BlockSpec(memory_space=pltpu.MemorySpace.SMEM),      # -alpha scalar
            pl.BlockSpec((block_rows, _LANE), lambda i: (i, 0)),    # gradient tile
        ],
        out_specs=pl.BlockSpec((block_rows, _LANE), lambda i: (i, 0)),
        input_output_aliases={1: 0},                  # donate the gradient slab
        compiler_params=pltpu.CompilerParams(
            dimension_semantics=("parallel",),        # megacore-splittable grid
            vmem_limit_bytes=_VMEM_LIMIT_BYTES,
        ),
        cost_estimate=pl.CostEstimate(
            flops=n, transcendentals=0, bytes_accessed=2 * n * itemsize),
    )(neg_alpha, g2)

    return out.reshape(orig_shape)


def _reverse_grad(g, alpha):
    """Dispatch: fused-XLA fast path for small/unaligned grads, Pallas otherwise."""
    n = g.size
    if n == 0:
        return g
    itemsize = jnp.dtype(g.dtype).itemsize
    if (n % _LANE != 0) or (n * itemsize < _SMALL_SIZE_BYTES):
        # XLA fuses the scalar multiply into the upstream gradient producer;
        # a standalone kernel can only add overhead here.
        return (g.astype(jnp.float32) * (-jnp.asarray(alpha, jnp.float32))).astype(g.dtype)
    return _neg_scale_pallas(g, alpha)


# ---------------- GradientFlipper with custom VJP ----------------

@jax.custom_vjp
def _gradient_flipper(x, alpha):
    # Forward is a pure view (x.view_as(x)) -> identity, no kernel needed.
    return x


def _gf_fwd(x, alpha):
    return x, alpha


def _gf_bwd(alpha, g):
    # Gradient reversal: -alpha * g for x; alpha receives zero gradient
    # (PyTorch returns None for it).
    return _reverse_grad(g, alpha), jnp.zeros_like(alpha)


_gradient_flipper.defvjp(_gf_fwd, _gf_bwd)


def gradient_flipper(x, alpha=1.0):
    """GradientFlipper.forward: identity fwd, -alpha * grad bwd.

    `alpha` may be a Python number or a traced jnp scalar (annealed per step)
    without triggering recompilation.
    """
    alpha = jnp.asarray(alpha, dtype=jnp.float32)
    return _gradient_flipper(x, alpha)


# ---------------- demo / self-test ----------------

if __name__ == "__main__":
    key = jax.random.PRNGKey(0)
    k0, k1, k2 = jax.random.split(key, 3)

    # Spec-consistent small NCHW input (batch=2, channels=4, spatial=16).
    x = jax.random.normal(k0, (2, 4, 16, 16), dtype=jnp.float32)
    alpha = 2.5

    # Forward pass: identity.
    y = gradient_flipper(x, alpha)
    jax.block_until_ready(y)
    assert y.shape == x.shape and y.dtype == x.dtype
    assert jnp.allclose(y, x), "forward must be identity"

    # Backward at the small spec shape (fast path: fused XLA scale).
    g_small = jax.grad(lambda xx: jnp.sum(gradient_flipper(xx, alpha)))(x)
    jax.block_until_ready(g_small)
    assert g_small.shape == x.shape and g_small.dtype == x.dtype
    assert jnp.allclose(g_small, -alpha * jnp.ones_like(x)), "bwd must be -alpha*g"

    # Larger gradient routed end-to-end through the Pallas kernel via jax.grad
    # (2 MiB f32, lane-aligned -> Pallas path), with a weighted upstream grad
    # so the check is nontrivial.
    xb = jax.random.normal(k1, (2, 64, 64, 64), dtype=jnp.float32)
    wb = jax.random.normal(k2, xb.shape, dtype=jnp.float32)
    gb = jax.grad(lambda xx: jnp.sum(gradient_flipper(xx, alpha) * wb))(xb)
    jax.block_until_ready(gb)
    assert gb.shape == xb.shape and gb.dtype == xb.dtype
    assert jnp.allclose(gb, -alpha * wb, atol=1e-5, rtol=1e-5), "Pallas bwd mismatch"

    # Direct kernel check (guaranteed Pallas path), including bf16 gradients.
    g_f32 = jax.random.normal(k2, (1024, 256), dtype=jnp.float32)
    out_f32 = _neg_scale_pallas(g_f32, jnp.float32(1.7))
    jax.block_until_ready(out_f32)
    assert jnp.allclose(out_f32, -1.7 * g_f32, atol=1e-5, rtol=1e-5)

    g_bf16 = g_f32.astype(jnp.bfloat16)
    out_bf16 = _neg_scale_pallas(g_bf16, jnp.float32(1.7))
    jax.block_until_ready(out_bf16)
    assert jnp.allclose(out_bf16.astype(jnp.float32),
                        (-1.7 * g_bf16.astype(jnp.float32)), atol=2e-2, rtol=2e-2)

    print("KERNEL_OK")
</pallas_src>

<mosaic_0001>
module attributes {stable_mosaic.version = 11 : i64} {
  func.func @_neg_scale_kernel(%arg0: i32, %arg1: memref<1xf32, #tpu.memory_space<smem>>, %arg2: memref<1024x128xf32, #tpu.memory_space<vmem>>, %arg3: memref<1024x128xf32, #tpu.memory_space<vmem>>) attributes {dimension_semantics = [#tpu.dimension_semantics<parallel>], iteration_bounds = array<i64: 4>, scalar_prefetch = 0 : i64, scratch_operands = 0 : i64, tpu.core_type = #tpu.core_type<tc>, window_params = [{transform_indices = @transform_0, window_bounds = array<i64: 1>}, {transform_indices = @transform_1, window_bounds = array<i64: 1024, 128>}, {transform_indices = @transform_2, window_bounds = array<i64: 1024, 128>}]} {
    %c0 = arith.constant 0 : index
    %0 = memref.load %arg1[%c0] : memref<1xf32, #tpu.memory_space<smem>>
    %c0_0 = arith.constant 0 : index
    %c0_1 = arith.constant 0 : index
    %1 = vector.load %arg2[%c0_0, %c0_1] : memref<1024x128xf32, #tpu.memory_space<vmem>>, vector<1024x128xf32>
    %2 = vector.broadcast %0 : f32 to vector<1024x128xf32>
    %3 = arith.mulf %1, %2 : vector<1024x128xf32>
    %c0_2 = arith.constant 0 : index
    %c0_3 = arith.constant 0 : index
    %4 = vector.load %arg3[%c0_2, %c0_3] : memref<1024x128xf32, #tpu.memory_space<vmem>>, vector<1024x128xf32>
    tpu.vector_store %arg3[%c0_2, %c0_3], %3 {strides = array<i32>} : memref<1024x128xf32, #tpu.memory_space<vmem>>, vector<1024x128xf32>,
    return
  }
  func.func @transform_0(%arg0: i32) -> i32 {
    %c0_i32 = arith.constant 0 : i32
    %c0_i32_0 = arith.constant 0 : i32
    return %c0_i32 : i32
  }
  func.func @transform_1(%arg0: i32) -> (i32, i32) {
    %c0_i32 = arith.constant 0 : i32
    %c0_i32_0 = arith.constant 0 : i32
    return %arg0, %c0_i32 : i32, i32
  }
  func.func @transform_2(%arg0: i32) -> (i32, i32) {
    %c0_i32 = arith.constant 0 : i32
    %c0_i32_0 = arith.constant 0 : i32
    return %arg0, %c0_i32 : i32, i32
  }
}

</mosaic_0001>

<llo_original>
// kernel: tpu_custom_call.1
$region0: #{tpu_custom_call.1}
  #allocation0 [shape = 'u32[]', space=smem, size = 0x4, offset = 0x4, fixed_abs, tag = 'smem constant byte address 0x4 - core index']
  #allocation1 [shape = 'u32[144,128]{1,0:T(1,128)}', space=vmem, size = 0x12000, scoped, tag = 'internal scratch']
  #allocation2 [shape = 'f32[1]{0:T(128)S(6)}', space=smem, size = 0x200, scoped, tag = 'scoped memory for tpu_custom_call.1']
  %s0 = inlined_call_operand.<no memory space> [shape: f32[1], index: 0, kind: input, shape index: {}]
  %s1 = inlined_call_operand.hbm [shape: f32[4096,128], index: 1, kind: input, shape index: {}, may-alias: {1,2}]
  %s2 = inlined_call_operand.hbm [shape: f32[4096,128], index: 2, kind: output, shape index: {}, may-alias: {1,2}]
  %s3 = sld [smem:[#allocation0]]
  $region45: #{tpu_custom_call.1} parent=0
    _
  %s5 = ssub.s32 1, %s3
  %s6 = scalar_select 0, %s5, %s3
  %7 = sst [smem:[#allocation2]] %s0
  $region1: #{tpu_custom_call.1} parent=0
    #allocation3 [shape = 'u8[1048576]{0}', space=vmem, size = 0x100000, scoped, tag = 'input window, operand 1']
    #allocation4 [shape = 's32[2]{0}', space=sflag, size = 0x8, scoped, tag = 'scoped memory for tpu_custom_call.1']
    #allocation5 [shape = 's32[2]{0}', space=sflag, size = 0x8, scoped, tag = 'scoped memory for tpu_custom_call.1']
    #allocation6 [shape = 'u8[1048576]{0}', space=vmem, size = 0x100000, scoped, tag = 'output window, operand 0']
    %8 = vsyncpa [#allocation4], 0
    %s9 = scalar_lea.sflag [#allocation4], 1
    %10 = vsyncpa %s9, 0
    %11 = vsyncpa [#allocation5], 0
    %s12 = scalar_lea.sflag [#allocation5], 1
    %13 = vsyncpa %s12, 0
    loop: start=0, step=1, limit=6
    $region2: #{tpu_custom_call.1} parent=1 // loop_pre_header
      _
    $region3: #{tpu_custom_call.1} parent=1 // loop_header
      %s15 = sphi 0, %s19
      %p16 = scmp.ge.s32.totalorder %s15, 6
      %s23 = sphi 0, %s23
      %s25 = sphi 0, %s23
      %s26 = sphi 0, %s25
      %s40 = sphi 0, %s26
      %s46 = sphi 0, %s48
      %s49 = sphi 0, %s46
      %s50 = sphi 0, %s49
      %s66 = sphi 0, %s50
      %s72 = sphi 0, %s74
      %s75 = sphi 0, %s72
      %s76 = sphi 0, %s75
      %s92 = sphi 0, %s76
    $region4: #{tpu_custom_call.1} parent=1 // loop_header_branch
      %18 = sbr.rel (%p16) target = $region8
    $region5: #{tpu_custom_call.1} parent=1 // loop_body
      %s20 = ssub.s32 %s15, 1
      %s21 = ssub.s32 %s15, 2
      %s22 = sadd.s32 %s15, 1
      %s24 = sadd.s32 %s23, 1
      %p27 = scmp.eq.s32.totalorder %s15, 3
      %p28 = scmp.ne.s32.totalorder %s23, %s25
      %p29 = scmp.eq.s32.totalorder %s15, 0
      %p30 = por %p28, %p29
      %p31 = scmp.ne.s32.totalorder %s23, %s25
      %p32 = scmp.eq.s32.totalorder %s20, 3
      %p33 = por %p31, %p32
      %p34 = scmp.ne.s32.totalorder %s25, %s26
      %p35 = scmp.eq.s32.totalorder %s20, 0
      %p36 = por %p34, %p35
      %p37 = scmp.ne.s32.totalorder %s25, %s26
      %p38 = scmp.eq.s32.totalorder %s21, 3
      %p39 = por %p37, %p38
      %p41 = scmp.ne.s32.totalorder %s26, %s40
      %p42 = scmp.eq.s32.totalorder %s21, 0
      %p43 = por %p41, %p42
      %s44 = ssub.s32 %s15, %s22
      %p45 = scmp.eq.s32.totalorder %s44, 0
      %s47 = sadd.s32 %s46, 1
      %s48 = scalar_select %p45, %s46, %s47
      %p51 = pneg %p45
      %p52 = scmp.eq.s32.totalorder %s15, 3
      %p53 = por %p51, %p52
      %p54 = scmp.ne.s32.totalorder %s46, %s49
      %p55 = scmp.eq.s32.totalorder %s15, 0
      %p56 = por %p54, %p55
      %p57 = scmp.ne.s32.totalorder %s46, %s49
      %p58 = scmp.eq.s32.totalorder %s20, 3
      %p59 = por %p57, %p58
      %p60 = scmp.ne.s32.totalorder %s49, %s50
      %p61 = scmp.eq.s32.totalorder %s20, 0
      %p62 = por %p60, %p61
      %p63 = scmp.ne.s32.totalorder %s49, %s50
      %p64 = scmp.eq.s32.totalorder %s21, 3
      %p65 = por %p63, %p64
      %p67 = scmp.ne.s32.totalorder %s50, %s66
      %p68 = scmp.eq.s32.totalorder %s21, 0
      %p69 = por %p67, %p68
      %s70 = ssub.s32 %s15, %s22
      %p71 = scmp.eq.s32.totalorder %s70, 0
      %s73 = sadd.s32 %s72, 1
      %s74 = scalar_select %p71, %s72, %s73
      %p77 = pneg %p71
      %p78 = scmp.eq.s32.totalorder %s15, 3
      %p79 = por %p77, %p78
      %p80 = scmp.ne.s32.totalorder %s72, %s75
      %p81 = scmp.eq.s32.totalorder %s15, 0
      %p82 = por %p80, %p81
      %p83 = scmp.ne.s32.totalorder %s72, %s75
      %p84 = scmp.eq.s32.totalorder %s20, 3
      %p85 = por %p83, %p84
      %p86 = scmp.ne.s32.totalorder %s75, %s76
      %p87 = scmp.eq.s32.totalorder %s20, 0
      %p88 = por %p86, %p87
      %p89 = scmp.ne.s32.totalorder %s75, %s76
      %p90 = scmp.eq.s32.totalorder %s21, 3
      %p91 = por %p89, %p90
      %p93 = scmp.ne.s32.totalorder %s76, %s92
      %p94 = scmp.eq.s32.totalorder %s21, 0
      %p95 = por %p93, %p94
      %p96 = scmp.le.s32.totalorder 1, %s15
      %p97 = scmp.lt.s32.totalorder %s15, 5
      %p98 = pnand %p96, %p97
      %p99 = pneg %p98
      // Predicated region
      $region9: #{tpu_custom_call.1} parent=5 // pred_check
        _
      $region10: #{tpu_custom_call.1} parent=5 // pred_check_branch
        %101 = sbr.rel (%p98) target = $region12
      $region11: #{tpu_custom_call.1} parent=5 // pred_region
        %s102 = ssub.s32 %s15, 1
        // Predicated region
        $region13: #{tpu_custom_call.1} parent=11 // pred_check
          %p103 = pneg %p36
        $region14: #{tpu_custom_call.1} parent=11 // pred_check_branch
          %105 = sbr.rel (%p103) target = $region16
        $region15: #{tpu_custom_call.1} parent=11 // pred_region
          _
        $region16: #{tpu_custom_call.1} parent=11 // pred_fallthru
          _
      $region12: #{tpu_custom_call.1} parent=5 // pred_fallthru
        _
      %p106 = scmp.lt.s32.totalorder %s15, 4
      // Predicated region
      $region17: #{tpu_custom_call.1} parent=5 // pred_check
        %p107 = pneg %p106
      $region18: #{tpu_custom_call.1} parent=5 // pred_check_branch
        %109 = sbr.rel (%p107) target = $region20
      $region19: #{tpu_custom_call.1} parent=5 // pred_region
        // Predicated region
        $region21: #{tpu_custom_call.1} parent=19 // pred_check
          %p110 = pneg %p56
        $region22: #{tpu_custom_call.1} parent=19 // pred_check_branch
          %112 = sbr.rel (%p110) target = $region24
        $region23: #{tpu_custom_call.1} parent=19 // pred_region
          %s113 = sand.u32 %s46, 1
          %s114 = scalar_lea.sflag [#allocation4], %s113
          %s115 = sand.u32 %s46, 1
          %s116 = smul.addr %s115, 1024
          %s117 = scalar_lea.vmem [#allocation3], %s116
          %s118 = smul.u32 128, %s15
          %s120 = ssub.s32 16384, 16384
          %121 = vsyncadd %s114, %s120
          %s122 = smul.addr %s118, 128
          %s123 = scalar_lea.hbm %s1, %s122
          %s124 = sshll.u32 %s117, 4
          %s125 = int_to_ptr.vmem [resolvable:$true] %s124
          %130 = dma.hbm_to_vmem [thread:$0]  %s123, 16384, %s125, %s114, 128, 128, 8
        $region24: #{tpu_custom_call.1} parent=19 // pred_fallthru
          _
      $region20: #{tpu_custom_call.1} parent=5 // pred_fallthru
        _
      %p131 = scmp.le.s32.totalorder 1, %s15
      %p132 = scmp.lt.s32.totalorder %s15, 5
      %p133 = pnand %p131, %p132
      %p134 = pneg %p133
      // Predicated region
      $region25: #{tpu_custom_call.1} parent=5 // pred_check
        _
      $region26: #{tpu_custom_call.1} parent=5 // pred_check_branch
        %136 = sbr.rel (%p133) target = $region28
      $region27: #{tpu_custom_call.1} parent=5 // pred_region
        %s137 = ssub.s32 %s15, 1
        %s138 = sand.u32 %s49, 1
        %s139 = scalar_lea.sflag [#allocation4], %s138
        %s140 = sand.u32 %s49, 1
        %s141 = smul.addr %s140, 1024
        %s142 = scalar_lea.vmem [#allocation3], %s141
        // Predicated region
        $region29: #{tpu_custom_call.1} parent=27 // pred_check
          %p143 = pneg %p62
        $region30: #{tpu_custom_call.1} parent=27 // pred_check_branch
          %145 = sbr.rel (%p143) target = $region32
        $region31: #{tpu_custom_call.1} parent=27 // pred_region
          %146 = dma.done %s139, 16384
        $region32: #{tpu_custom_call.1} parent=27 // pred_fallthru
          _
        %p147 = pneg %p36
        %p148 = pneg %p33
        %s149 = sand.u32 %s49, 1
        %s150 = scalar_lea.sflag [#allocation4], %s149
        %s151 = sand.u32 %s49, 1
        %s152 = smul.addr %s151, 1024
        %s153 = scalar_lea.vmem [#allocation3], %s152
        %p154 = pneg %p62
        %p155 = pneg %p59
        %p156 = pneg %p88
        %p157 = pneg %p85
        %s158 = sand.u32 %s75, 1
        %s159 = scalar_lea.sflag [#allocation5], %s158
        %s160 = sand.u32 %s75, 1
        %s161 = smul.addr %s160, 1024
        %s162 = scalar_lea.vmem [#allocation6], %s161
        %s163 = smul.u32 128, %s20
        %s164 = smul.u32 128, %s20
        %s165 = sld [smem:[#allocation2]]
        %v166 = vld [vmem:[%s142] sm:$0xff]
        %v167 = vld [vmem:[%s142 + $0x8] sm:$0xff]
        %v168 = vld [vmem:[%s142 + $0x10] sm:$0xff]
        %v169 = vld [vmem:[%s142 + $0x18] sm:$0xff]
        %v170 = vld [vmem:[%s142 + $0x20] sm:$0xff]
        %v171 = vld [vmem:[%s142 + $0x28] sm:$0xff]
        %v172 = vld [vmem:[%s142 + $0x30] sm:$0xff]
        %v173 = vld [vmem:[%s142 + $0x38] sm:$0xff]
        %v174 = vld [vmem:[%s142 + $0x40] sm:$0xff]
        %v175 = vld [vmem:[%s142 + $0x48] sm:$0xff]
        %v176 = vld [vmem:[%s142 + $0x50] sm:$0xff]
        %v177 = vld [vmem:[%s142 + $0x58] sm:$0xff]
        %v178 = vld [vmem:[%s142 + $0x60] sm:$0xff]
        %v179 = vld [vmem:[%s142 + $0x68] sm:$0xff]
        %v180 = vld [vmem:[%s142 + $0x70] sm:$0xff]
        %v181 = vld [vmem:[%s142 + $0x78] sm:$0xff]
        %v182 = vld [vmem:[%s142 + $0x80] sm:$0xff]
        %v183 = vld [vmem:[%s142 + $0x88] sm:$0xff]
        %v184 = vld [vmem:[%s142 + $0x90] sm:$0xff]
        %v185 = vld [vmem:[%s142 + $0x98] sm:$0xff]
        %v186 = vld [vmem:[%s142 + $0xa0] sm:$0xff]
        %v187 = vld [vmem:[%s142 + $0xa8] sm:$0xff]
        %v188 = vld [vmem:[%s142 + $0xb0] sm:$0xff]
        %v189 = vld [vmem:[%s142 + $0xb8] sm:$0xff]
        %v190 = vld [vmem:[%s142 + $0xc0] sm:$0xff]
        %v191 = vld [vmem:[%s142 + $0xc8] sm:$0xff]
        %v192 = vld [vmem:[%s142 + $0xd0] sm:$0xff]
        %v193 = vld [vmem:[%s142 + $0xd8] sm:$0xff]
        %v194 = vld [vmem:[%s142 + $0xe0] sm:$0xff]
        %v195 = vld [vmem:[%s142 + $0xe8] sm:$0xff]
        %v196 = vld [vmem:[%s142 + $0xf0] sm:$0xff]
        %v197 = vld [vmem:[%s142 + $0xf8] sm:$0xff]
        %v198 = vld [vmem:[%s142 + $0x100] sm:$0xff]
        %v199 = vld [vmem:[%s142 + $0x108] sm:$0xff]
        %v200 = vld [vmem:[%s142 + $0x110] sm:$0xff]
        %v201 = vld [vmem:[%s142 + $0x118] sm:$0xff]
        %v202 = vld [vmem:[%s142 + $0x120] sm:$0xff]
        %v203 = vld [vmem:[%s142 + $0x128] sm:$0xff]
        %v204 = vld [vmem:[%s142 + $0x130] sm:$0xff]
        %v205 = vld [vmem:[%s142 + $0x138] sm:$0xff]
        %v206 = vld [vmem:[%s142 + $0x140] sm:$0xff]
        %v207 = vld [vmem:[%s142 + $0x148] sm:$0xff]
        %v208 = vld [vmem:[%s142 + $0x150] sm:$0xff]
        %v209 = vld [vmem:[%s142 + $0x158] sm:$0xff]
        %v210 = vld [vmem:[%s142 + $0x160] sm:$0xff]
        %v211 = vld [vmem:[%s142 + $0x168] sm:$0xff]
        %v212 = vld [vmem:[%s142 + $0x170] sm:$0xff]
        %v213 = vld [vmem:[%s142 + $0x178] sm:$0xff]
        %v214 = vld [vmem:[%s142 + $0x180] sm:$0xff]
        %v215 = vld [vmem:[%s142 + $0x188] sm:$0xff]
        %v216 = vld [vmem:[%s142 + $0x190] sm:$0xff]
        %v217 = vld [vmem:[%s142 + $0x198] sm:$0xff]
        %v218 = vld [vmem:[%s142 + $0x1a0] sm:$0xff]
        %v219 = vld [vmem:[%s142 + $0x1a8] sm:$0xff]
        %v220 = vld [vmem:[%s142 + $0x1b0] sm:$0xff]
        %v221 = vld [vmem:[%s142 + $0x1b8] sm:$0xff]
        %v222 = vld [vmem:[%s142 + $0x1c0] sm:$0xff]
        %v223 = vld [vmem:[%s142 + $0x1c8] sm:$0xff]
        %v224 = vld [vmem:[%s142 + $0x1d0] sm:$0xff]
        %v225 = vld [vmem:[%s142 + $0x1d8] sm:$0xff]
        %v226 = vld [vmem:[%s142 + $0x1e0] sm:$0xff]
        %v227 = vld [vmem:[%s142 + $0x1e8] sm:$0xff]
        %v228 = vld [vmem:[%s142 + $0x1f0] sm:$0xff]
        %v229 = vld [vmem:[%s142 + $0x1f8] sm:$0xff]
        %v230 = vld [vmem:[%s142 + $0x200] sm:$0xff]
        %v231 = vld [vmem:[%s142 + $0x208] sm:$0xff]
        %v232 = vld [vmem:[%s142 + $0x210] sm:$0xff]
        %v233 = vld [vmem:[%s142 + $0x218] sm:$0xff]
        %v234 = vld [vmem:[%s142 + $0x220] sm:$0xff]
        %v235 = vld [vmem:[%s142 + $0x228] sm:$0xff]
        %v236 = vld [vmem:[%s142 + $0x230] sm:$0xff]
        %v237 = vld [vmem:[%s142 + $0x238] sm:$0xff]
        %v238 = vld [vmem:[%s142 + $0x240] sm:$0xff]
        %v239 = vld [vmem:[%s142 + $0x248] sm:$0xff]
        %v240 = vld [vmem:[%s142 + $0x250] sm:$0xff]
        %v241 = vld [vmem:[%s142 + $0x258] sm:$0xff]
        %v242 = vld [vmem:[%s142 + $0x260] sm:$0xff]
        %v243 = vld [vmem:[%s142 + $0x268] sm:$0xff]
        %v244 = vld [vmem:[%s142 + $0x270] sm:$0xff]
        %v245 = vld [vmem:[%s142 + $0x278] sm:$0xff]
        %v246 = vld [vmem:[%s142 + $0x280] sm:$0xff]
        %v247 = vld [vmem:[%s142 + $0x288] sm:$0xff]
        %v248 = vld [vmem:[%s142 + $0x290] sm:$0xff]
        %v249 = vld [vmem:[%s142 + $0x298] sm:$0xff]
        %v250 = vld [vmem:[%s142 + $0x2a0] sm:$0xff]
        %v251 = vld [vmem:[%s142 + $0x2a8] sm:$0xff]
        %v252 = vld [vmem:[%s142 + $0x2b0] sm:$0xff]
        %v253 = vld [vmem:[%s142 + $0x2b8] sm:$0xff]
        %v254 = vld [vmem:[%s142 + $0x2c0] sm:$0xff]
        %v255 = vld [vmem:[%s142 + $0x2c8] sm:$0xff]
        %v256 = vld [vmem:[%s142 + $0x2d0] sm:$0xff]
        %v257 = vld [vmem:[%s142 + $0x2d8] sm:$0xff]
        %v258 = vld [vmem:[%s142 + $0x2e0] sm:$0xff]
        %v259 = vld [vmem:[%s142 + $0x2e8] sm:$0xff]
        %v260 = vld [vmem:[%s142 + $0x2f0] sm:$0xff]
        %v261 = vld [vmem:[%s142 + $0x2f8] sm:$0xff]
        %v262 = vld [vmem:[%s142 + $0x300] sm:$0xff]
        %v263 = vld [vmem:[%s142 + $0x308] sm:$0xff]
        %v264 = vld [vmem:[%s142 + $0x310] sm:$0xff]
        %v265 = vld [vmem:[%s142 + $0x318] sm:$0xff]
        %v266 = vld [vmem:[%s142 + $0x320] sm:$0xff]
        %v267 = vld [vmem:[%s142 + $0x328] sm:$0xff]
        %v268 = vld [vmem:[%s142 + $0x330] sm:$0xff]
        %v269 = vld [vmem:[%s142 + $0x338] sm:$0xff]
        %v270 = vld [vmem:[%s142 + $0x340] sm:$0xff]
        %v271 = vld [vmem:[%s142 + $0x348] sm:$0xff]
        %v272 = vld [vmem:[%s142 + $0x350] sm:$0xff]
        %v273 = vld [vmem:[%s142 + $0x358] sm:$0xff]
        %v274 = vld [vmem:[%s142 + $0x360] sm:$0xff]
        %v275 = vld [vmem:[%s142 + $0x368] sm:$0xff]
        %v276 = vld [vmem:[%s142 + $0x370] sm:$0xff]
        %v277 = vld [vmem:[%s142 + $0x378] sm:$0xff]
        %v278 = vld [vmem:[%s142 + $0x380] sm:$0xff]
        %v279 = vld [vmem:[%s142 + $0x388] sm:$0xff]
        %v280 = vld [vmem:[%s142 + $0x390] sm:$0xff]
        %v281 = vld [vmem:[%s142 + $0x398] sm:$0xff]
        %v282 = vld [vmem:[%s142 + $0x3a0] sm:$0xff]
        %v283 = vld [vmem:[%s142 + $0x3a8] sm:$0xff]
        %v284 = vld [vmem:[%s142 + $0x3b0] sm:$0xff]
        %v285 = vld [vmem:[%s142 + $0x3b8] sm:$0xff]
        %v286 = vld [vmem:[%s142 + $0x3c0] sm:$0xff]
        %v287 = vld [vmem:[%s142 + $0x3c8] sm:$0xff]
        %v288 = vld [vmem:[%s142 + $0x3d0] sm:$0xff]
        %v289 = vld [vmem:[%s142 + $0x3d8] sm:$0xff]
        %v290 = vld [vmem:[%s142 + $0x3e0] sm:$0xff]
        %v291 = vld [vmem:[%s142 + $0x3e8] sm:$0xff]
        %v292 = vld [vmem:[%s142 + $0x3f0] sm:$0xff]
        %v293 = vld [vmem:[%s142 + $0x3f8] sm:$0xff]
        %v294 = vstv %s165
        %v295 = vmul.f32 %v166, %v294
        %v296 = vmul.f32 %v167, %v294
        %v297 = vmul.f32 %v168, %v294
        %v298 = vmul.f32 %v169, %v294
        %v299 = vmul.f32 %v170, %v294
        %v300 = vmul.f32 %v171, %v294
        %v301 = vmul.f32 %v172, %v294
        %v302 = vmul.f32 %v173, %v294
        %v303 = vmul.f32 %v174, %v294
        %v304 = vmul.f32 %v175, %v294
        %v305 = vmul.f32 %v176, %v294
        %v306 = vmul.f32 %v177, %v294
        %v307 = vmul.f32 %v178, %v294
        %v308 = vmul.f32 %v179, %v294
        %v309 = vmul.f32 %v180, %v294
        %v310 = vmul.f32 %v181, %v294
        %v311 = vmul.f32 %v182, %v294
        %v312 = vmul.f32 %v183, %v294
        %v313 = vmul.f32 %v184, %v294
        %v314 = vmul.f32 %v185, %v294
        %v315 = vmul.f32 %v186, %v294
        %v316 = vmul.f32 %v187, %v294
        %v317 = vmul.f32 %v188, %v294
        %v318 = vmul.f32 %v189, %v294
        %v319 = vmul.f32 %v190, %v294
        %v320 = vmul.f32 %v191, %v294
        %v321 = vmul.f32 %v192, %v294
        %v322 = vmul.f32 %v193, %v294
        %v323 = vmul.f32 %v194, %v294
        %v324 = vmul.f32 %v195, %v294
        %v325 = vmul.f32 %v196, %v294
        %v326 = vmul.f32 %v197, %v294
        %v327 = vmul.f32 %v198, %v294
        %v328 = vmul.f32 %v199, %v294
        %v329 = vmul.f32 %v200, %v294
        %v330 = vmul.f32 %v201, %v294
        %v331 = vmul.f32 %v202, %v294
        %v332 = vmul.f32 %v203, %v294
        %v333 = vmul.f32 %v204, %v294
        %v334 = vmul.f32 %v205, %v294
        %v335 = vmul.f32 %v206, %v294
        %v336 = vmul.f32 %v207, %v294
        %v337 = vmul.f32 %v208, %v294
        %v338 = vmul.f32 %v209, %v294
        %v339 = vmul.f32 %v210, %v294
        %v340 = vmul.f32 %v211, %v294
        %v341 = vmul.f32 %v212, %v294
        %v342 = vmul.f32 %v213, %v294
        %v343 = vmul.f32 %v214, %v294
        %v344 = vmul.f32 %v215, %v294
        %v345 = vmul.f32 %v216, %v294
        %v346 = vmul.f32 %v217, %v294
        %v347 = vmul.f32 %v218, %v294
        %v348 = vmul.f32 %v219, %v294
        %v349 = vmul.f32 %v220, %v294
        %v350 = vmul.f32 %v221, %v294
        %v351 = vmul.f32 %v222, %v294
        %v352 = vmul.f32 %v223, %v294
        %v353 = vmul.f32 %v224, %v294
        %v354 = vmul.f32 %v225, %v294
        %v355 = vmul.f32 %v226, %v294
        %v356 = vmul.f32 %v227, %v294
        %v357 = vmul.f32 %v228, %v294
        %v358 = vmul.f32 %v229, %v294
        %v359 = vmul.f32 %v230, %v294
        %v360 = vmul.f32 %v231, %v294
        %v361 = vmul.f32 %v232, %v294
        %v362 = vmul.f32 %v233, %v294
        %v363 = vmul.f32 %v234, %v294
        %v364 = vmul.f32 %v235, %v294
        %v365 = vmul.f32 %v236, %v294
        %v366 = vmul.f32 %v237, %v294
        %v367 = vmul.f32 %v238, %v294
        %v368 = vmul.f32 %v239, %v294
        %v369 = vmul.f32 %v240, %v294
        %v370 = vmul.f32 %v241, %v294
        %v371 = vmul.f32 %v242, %v294
        %v372 = vmul.f32 %v243, %v294
        %v373 = vmul.f32 %v244, %v294
        %v374 = vmul.f32 %v245, %v294
        %v375 = vmul.f32 %v246, %v294
        %v376 = vmul.f32 %v247, %v294
        %v377 = vmul.f32 %v248, %v294
        %v378 = vmul.f32 %v249, %v294
        %v379 = vmul.f32 %v250, %v294
        %v380 = vmul.f32 %v251, %v294
        %v381 = vmul.f32 %v252, %v294
        %v382 = vmul.f32 %v253, %v294
        %v383 = vmul.f32 %v254, %v294
        %v384 = vmul.f32 %v255, %v294
        %v385 = vmul.f32 %v256, %v294
        %v386 = vmul.f32 %v257, %v294
        %v387 = vmul.f32 %v258, %v294
        %v388 = vmul.f32 %v259, %v294
        %v389 = vmul.f32 %v260, %v294
        %v390 = vmul.f32 %v261, %v294
        %v391 = vmul.f32 %v262, %v294
        %v392 = vmul.f32 %v263, %v294
        %v393 = vmul.f32 %v264, %v294
        %v394 = vmul.f32 %v265, %v294
        %v395 = vmul.f32 %v266, %v294
        %v396 = vmul.f32 %v267, %v294
        %v397 = vmul.f32 %v268, %v294
        %v398 = vmul.f32 %v269, %v294
        %v399 = vmul.f32 %v270, %v294
        %v400 = vmul.f32 %v271, %v294
        %v401 = vmul.f32 %v272, %v294
        %v402 = vmul.f32 %v273, %v294
        %v403 = vmul.f32 %v274, %v294
        %v404 = vmul.f32 %v275, %v294
        %v405 = vmul.f32 %v276, %v294
        %v406 = vmul.f32 %v277, %v294
        %v407 = vmul.f32 %v278, %v294
        %v408 = vmul.f32 %v279, %v294
        %v409 = vmul.f32 %v280, %v294
        %v410 = vmul.f32 %v281, %v294
        %v411 = vmul.f32 %v282, %v294
        %v412 = vmul.f32 %v283, %v294
        %v413 = vmul.f32 %v284, %v294
        %v414 = vmul.f32 %v285, %v294
        %v415 = vmul.f32 %v286, %v294
        %v416 = vmul.f32 %v287, %v294
        %v417 = vmul.f32 %v288, %v294
        %v418 = vmul.f32 %v289, %v294
        %v419 = vmul.f32 %v290, %v294
        %v420 = vmul.f32 %v291, %v294
        %v421 = vmul.f32 %v292, %v294
        %v422 = vmul.f32 %v293, %v294
        %423 = vst [vmem:[%s162] sm:$0xff] %v295
        %424 = vst [vmem:[%s162 + $0x8] sm:$0xff] %v296
        %425 = vst [vmem:[%s162 + $0x10] sm:$0xff] %v297
        %426 = vst [vmem:[%s162 + $0x18] sm:$0xff] %v298
        %427 = vst [vmem:[%s162 + $0x20] sm:$0xff] %v299
        %428 = vst [vmem:[%s162 + $0x28] sm:$0xff] %v300
        %429 = vst [vmem:[%s162 + $0x30] sm:$0xff] %v301
        %430 = vst [vmem:[%s162 + $0x38] sm:$0xff] %v302
        %431 = vst [vmem:[%s162 + $0x40] sm:$0xff] %v303
        %432 = vst [vmem:[%s162 + $0x48] sm:$0xff] %v304
        %433 = vst [vmem:[%s162 + $0x50] sm:$0xff] %v305
        %434 = vst [vmem:[%s162 + $0x58] sm:$0xff] %v306
        %435 = vst [vmem:[%s162 + $0x60] sm:$0xff] %v307
        %436 = vst [vmem:[%s162 + $0x68] sm:$0xff] %v308
        %437 = vst [vmem:[%s162 + $0x70] sm:$0xff] %v309
        %438 = vst [vmem:[%s162 + $0x78] sm:$0xff] %v310
        %439 = vst [vmem:[%s162 + $0x80] sm:$0xff] %v311
        %440 = vst [vmem:[%s162 + $0x88] sm:$0xff] %v312
        %441 = vst [vmem:[%s162 + $0x90] sm:$0xff] %v313
        %442 = vst [vmem:[%s162 + $0x98] sm:$0xff] %v314
        %443 = vst [vmem:[%s162 + $0xa0] sm:$0xff] %v315
        %444 = vst [vmem:[%s162 + $0xa8] sm:$0xff] %v316
        %445 = vst [vmem:[%s162 + $0xb0] sm:$0xff] %v317
        %446 = vst [vmem:[%s162 + $0xb8] sm:$0xff] %v318
        %447 = vst [vmem:[%s162 + $0xc0] sm:$0xff] %v319
        %448 = vst [vmem:[%s162 + $0xc8] sm:$0xff] %v320
        %449 = vst [vmem:[%s162 + $0xd0] sm:$0xff] %v321
        %450 = vst [vmem:[%s162 + $0xd8] sm:$0xff] %v322
        %451 = vst [vmem:[%s162 + $0xe0] sm:$0xff] %v323
        %452 = vst [vmem:[%s162 + $0xe8] sm:$0xff] %v324
        %453 = vst [vmem:[%s162 + $0xf0] sm:$0xff] %v325
        %454 = vst [vmem:[%s162 + $0xf8] sm:$0xff] %v326
        %455 = vst [vmem:[%s162 + $0x100] sm:$0xff] %v327
        %456 = vst [vmem:[%s162 + $0x108] sm:$0xff] %v328
        %457 = vst [vmem:[%s162 + $0x110] sm:$0xff] %v329
        %458 = vst [vmem:[%s162 + $0x118] sm:$0xff] %v330
        %459 = vst [vmem:[%s162 + $0x120] sm:$0xff] %v331
        %460 = vst [vmem:[%s162 + $0x128] sm:$0xff] %v332
        %461 = vst [vmem:[%s162 + $0x130] sm:$0xff] %v333
        %462 = vst [vmem:[%s162 + $0x138] sm:$0xff] %v334
        %463 = vst [vmem:[%s162 + $0x140] sm:$0xff] %v335
        %464 = vst [vmem:[%s162 + $0x148] sm:$0xff] %v336
        %465 = vst [vmem:[%s162 + $0x150] sm:$0xff] %v337
        %466 = vst [vmem:[%s162 + $0x158] sm:$0xff] %v338
        %467 = vst [vmem:[%s162 + $0x160] sm:$0xff] %v339
        %468 = vst [vmem:[%s162 + $0x168] sm:$0xff] %v340
        %469 = vst [vmem:[%s162 + $0x170] sm:$0xff] %v341
        %470 = vst [vmem:[%s162 + $0x178] sm:$0xff] %v342
        %471 = vst [vmem:[%s162 + $0x180] sm:$0xff] %v343
        %472 = vst [vmem:[%s162 + $0x188] sm:$0xff] %v344
        %473 = vst [vmem:[%s162 + $0x190] sm:$0xff] %v345
        %474 = vst [vmem:[%s162 + $0x198] sm:$0xff] %v346
        %475 = vst [vmem:[%s162 + $0x1a0] sm:$0xff] %v347
        %476 = vst [vmem:[%s162 + $0x1a8] sm:$0xff] %v348
        %477 = vst [vmem:[%s162 + $0x1b0] sm:$0xff] %v349
        %478 = vst [vmem:[%s162 + $0x1b8] sm:$0xff] %v350
        %479 = vst [vmem:[%s162 + $0x1c0] sm:$0xff] %v351
        %480 = vst [vmem:[%s162 + $0x1c8] sm:$0xff] %v352
        %481 = vst [vmem:[%s162 + $0x1d0] sm:$0xff] %v353
        %482 = vst [vmem:[%s162 + $0x1d8] sm:$0xff] %v354
        %483 = vst [vmem:[%s162 + $0x1e0] sm:$0xff] %v355
        %484 = vst [vmem:[%s162 + $0x1e8] sm:$0xff] %v356
        %485 = vst [vmem:[%s162 + $0x1f0] sm:$0xff] %v357
        %486 = vst [vmem:[%s162 + $0x1f8] sm:$0xff] %v358
        %487 = vst [vmem:[%s162 + $0x200] sm:$0xff] %v359
        %488 = vst [vmem:[%s162 + $0x208] sm:$0xff] %v360
        %489 = vst [vmem:[%s162 + $0x210] sm:$0xff] %v361
        %490 = vst [vmem:[%s162 + $0x218] sm:$0xff] %v362
        %491 = vst [vmem:[%s162 + $0x220] sm:$0xff] %v363
        %492 = vst [vmem:[%s162 + $0x228] sm:$0xff] %v364
        %493 = vst [vmem:[%s162 + $0x230] sm:$0xff] %v365
        %494 = vst [vmem:[%s162 + $0x238] sm:$0xff] %v366
        %495 = vst [vmem:[%s162 + $0x240] sm:$0xff] %v367
        %496 = vst [vmem:[%s162 + $0x248] sm:$0xff] %v368
        %497 = vst [vmem:[%s162 + $0x250] sm:$0xff] %v369
        %498 = vst [vmem:[%s162 + $0x258] sm:$0xff] %v370
        %499 = vst [vmem:[%s162 + $0x260] sm:$0xff] %v371
        %500 = vst [vmem:[%s162 + $0x268] sm:$0xff] %v372
        %501 = vst [vmem:[%s162 + $0x270] sm:$0xff] %v373
        %502 = vst [vmem:[%s162 + $0x278] sm:$0xff] %v374
        %503 = vst [vmem:[%s162 + $0x280] sm:$0xff] %v375
        %504 = vst [vmem:[%s162 + $0x288] sm:$0xff] %v376
        %505 = vst [vmem:[%s162 + $0x290] sm:$0xff] %v377
        %506 = vst [vmem:[%s162 + $0x298] sm:$0xff] %v378
        %507 = vst [vmem:[%s162 + $0x2a0] sm:$0xff] %v379
        %508 = vst [vmem:[%s162 + $0x2a8] sm:$0xff] %v380
        %509 = vst [vmem:[%s162 + $0x2b0] sm:$0xff] %v381
        %510 = vst [vmem:[%s162 + $0x2b8] sm:$0xff] %v382
        %511 = vst [vmem:[%s162 + $0x2c0] sm:$0xff] %v383
        %512 = vst [vmem:[%s162 + $0x2c8] sm:$0xff] %v384
        %513 = vst [vmem:[%s162 + $0x2d0] sm:$0xff] %v385
        %514 = vst [vmem:[%s162 + $0x2d8] sm:$0xff] %v386
        %515 = vst [vmem:[%s162 + $0x2e0] sm:$0xff] %v387
        %516 = vst [vmem:[%s162 + $0x2e8] sm:$0xff] %v388
        %517 = vst [vmem:[%s162 + $0x2f0] sm:$0xff] %v389
        %518 = vst [vmem:[%s162 + $0x2f8] sm:$0xff] %v390
        %519 = vst [vmem:[%s162 + $0x300] sm:$0xff] %v391
        %520 = vst [vmem:[%s162 + $0x308] sm:$0xff] %v392
        %521 = vst [vmem:[%s162 + $0x310] sm:$0xff] %v393
        %522 = vst [vmem:[%s162 + $0x318] sm:$0xff] %v394
        %523 = vst [vmem:[%s162 + $0x320] sm:$0xff] %v395
        %524 = vst [vmem:[%s162 + $0x328] sm:$0xff] %v396
        %525 = vst [vmem:[%s162 + $0x330] sm:$0xff] %v397
        %526 = vst [vmem:[%s162 + $0x338] sm:$0xff] %v398
        %527 = vst [vmem:[%s162 + $0x340] sm:$0xff] %v399
        %528 = vst [vmem:[%s162 + $0x348] sm:$0xff] %v400
        %529 = vst [vmem:[%s162 + $0x350] sm:$0xff] %v401
        %530 = vst [vmem:[%s162 + $0x358] sm:$0xff] %v402
        %531 = vst [vmem:[%s162 + $0x360] sm:$0xff] %v403
        %532 = vst [vmem:[%s162 + $0x368] sm:$0xff] %v404
        %533 = vst [vmem:[%s162 + $0x370] sm:$0xff] %v405
        %534 = vst [vmem:[%s162 + $0x378] sm:$0xff] %v406
        %535 = vst [vmem:[%s162 + $0x380] sm:$0xff] %v407
        %536 = vst [vmem:[%s162 + $0x388] sm:$0xff] %v408
        %537 = vst [vmem:[%s162 + $0x390] sm:$0xff] %v409
        %538 = vst [vmem:[%s162 + $0x398] sm:$0xff] %v410
        %539 = vst [vmem:[%s162 + $0x3a0] sm:$0xff] %v411
        %540 = vst [vmem:[%s162 + $0x3a8] sm:$0xff] %v412
        %541 = vst [vmem:[%s162 + $0x3b0] sm:$0xff] %v413
        %542 = vst [vmem:[%s162 + $0x3b8] sm:$0xff] %v414
        %543 = vst [vmem:[%s162 + $0x3c0] sm:$0xff] %v415
        %544 = vst [vmem:[%s162 + $0x3c8] sm:$0xff] %v416
        %545 = vst [vmem:[%s162 + $0x3d0] sm:$0xff] %v417
        %546 = vst [vmem:[%s162 + $0x3d8] sm:$0xff] %v418
        %547 = vst [vmem:[%s162 + $0x3e0] sm:$0xff] %v419
        %548 = vst [vmem:[%s162 + $0x3e8] sm:$0xff] %v420
        %549 = vst [vmem:[%s162 + $0x3f0] sm:$0xff] %v421
        %550 = vst [vmem:[%s162 + $0x3f8] sm:$0xff] %v422
        %s551 = sand.u32 %s75, 1
        %s552 = scalar_lea.sflag [#allocation5], %s551
        %s553 = sand.u32 %s75, 1
        %s554 = smul.addr %s553, 1024
        %s555 = scalar_lea.vmem [#allocation6], %s554
        // Predicated region
        $region33: #{tpu_custom_call.1} parent=27 // pred_check
          %p556 = pneg %p85
        $region34: #{tpu_custom_call.1} parent=27 // pred_check_branch
          %558 = sbr.rel (%p556) target = $region36
        $region35: #{tpu_custom_call.1} parent=27 // pred_region
          %s559 = smul.u32 128, %s20
          %s561 = ssub.s32 16384, 16384
          %562 = vsyncadd %s552, %s561
          %s563 = smul.addr %s559, 128
          %s564 = scalar_lea.hbm %s2, %s563
          %s565 = sshll.u32 %s555, 4
          %s566 = int_to_ptr.vmem [resolvable:$true] %s565
          %571 = dma.vmem_to_hbm [thread:$0]  %s566, 16384, %s564, %s552, 128, 128, 8
        $region36: #{tpu_custom_call.1} parent=27 // pred_fallthru
          _
      $region28: #{tpu_custom_call.1} parent=5 // pred_fallthru
        _
      %p572 = scmp.le.s32.totalorder 2, %s15
      // Predicated region
      $region37: #{tpu_custom_call.1} parent=5 // pred_check
        %p573 = pneg %p572
      $region38: #{tpu_custom_call.1} parent=5 // pred_check_branch
        %575 = sbr.rel (%p573) target = $region40
      $region39: #{tpu_custom_call.1} parent=5 // pred_region
        %s576 = ssub.s32 %s15, 2
        // Predicated region
        $region41: #{tpu_custom_call.1} parent=39 // pred_check
          %p577 = pneg %p91
        $region42: #{tpu_custom_call.1} parent=39 // pred_check_branch
          %579 = sbr.rel (%p577) target = $region44
        $region43: #{tpu_custom_call.1} parent=39 // pred_region
          %s580 = sand.u32 %s76, 1
          %s581 = scalar_lea.sflag [#allocation5], %s580
          %s582 = sand.u32 %s76, 1
          %s583 = smul.addr %s582, 1024
          %s584 = scalar_lea.vmem [#allocation6], %s583
          %585 = dma.done %s581, 16384
        $region44: #{tpu_custom_call.1} parent=39 // pred_fallthru
          _
      $region40: #{tpu_custom_call.1} parent=5 // pred_fallthru
        _
    $region6: #{tpu_custom_call.1} parent=1 // loop_footer
      %s19 = sadd.s32 1, %s15
    $region7: #{tpu_custom_call.1} parent=1 // loop_footer_branch
      %14 = sbr.rel target = $region3
    $region8: #{tpu_custom_call.1} parent=1 // loop_exit
      _
    %586 = vsyncpa [#allocation4], 1
    %s587 = scalar_lea.sflag [#allocation4], 1
    %588 = vsyncpa %s587, 1
    %589 = vsyncpa [#allocation5], 1
    %s590 = scalar_lea.sflag [#allocation5], 1
    %591 = vsyncpa %s590, 1

</llo_original>
